<compile_context>
chip_gen: v5e
topology: v5e:2x2
jax: 0.10.0
libtpu: 0.0.40
codegen_flags: <defaults>
</compile_context>

<pallas_src>
import jax
import jax.numpy as jnp
from jax.experimental import pallas as pl
from jax.experimental.pallas import tpu as pltpu

LATENT_DIM = 28
N_CLASSES = 4
IN_DIM = LATENT_DIM + N_CLASSES      # 32
H1, H2, H3, OUT = 256, 128, 64, 2
OUT_PAD = 128                        # lane-dense output width
BN_EPS = 0.8                         # nn.BatchNorm1d(n, 0.8) -> eps = 0.8
BT_MAX = 2048                        # max batch tile (fits 32 MiB scoped VMEM)
MIN_SPLIT = 256                      # B >= 2*MIN_SPLIT -> force >=2 grid steps


def _cdiv(a, b):
    return -(-a // b)


def _round_up(n, m):
    return _cdiv(n, m) * m


def generator_kernel(z_ref, lab_ref, w1z_ref, w1l_ref, w2_ref, w3_ref,
                     w4_ref, b_ref, o_ref):
    # z_ref: (bt, 28) f32; lab_ref: (bt, 4) f32; weights: bf16 (BN-folded);
    # b_ref: (8, 256) f32 packed biases (row i = layer i+1, zero-padded).
    b = b_ref[...]
    z = z_ref[...].astype(jnp.bfloat16)
    lab = lab_ref[...].astype(jnp.bfloat16)

    # Block 1: Linear(+folded BN) -> ReLU   (Dropout = identity in eval)
    # concat(z, labels) @ W1  ==  z @ W1[:28] + labels @ W1[28:]
    h = (jnp.dot(z, w1z_ref[...], preferred_element_type=jnp.float32)
         + jnp.dot(lab, w1l_ref[...], preferred_element_type=jnp.float32))
    h = jnp.maximum(h + b[0:1, :H1], 0.0)

    # Block 2
    h = jnp.dot(h.astype(jnp.bfloat16), w2_ref[...],
                preferred_element_type=jnp.float32)
    h = jnp.maximum(h + b[1:2, :H2], 0.0)

    # Block 3
    h = jnp.dot(h.astype(jnp.bfloat16), w3_ref[...],
                preferred_element_type=jnp.float32)
    h = jnp.maximum(h + b[2:3, :H3], 0.0)

    # Block 4: Linear(+folded BN) -> Tanh, lane-dense (128-wide) store.
    h = jnp.dot(h.astype(jnp.bfloat16), w4_ref[...],
                preferred_element_type=jnp.float32)
    o_ref[...] = jnp.tanh(h + b[3:4, :OUT_PAD])


def make_params(key):
    """Deterministic PyTorch-style init with BatchNorm folded into the Linears.

    Returns (w1z, w1l, w2, w3, w4_padded) as bf16 (in, out) matrices and a
    packed (8, 256) f32 bias array.  w4 / bias row 3 are zero-padded to 128
    output lanes for a lane-dense store (exact: padded lanes are discarded).
    """
    dims = [(IN_DIM, H1), (H1, H2), (H2, H3), (H3, OUT)]
    keys = jax.random.split(key, 2 * len(dims))
    raw_w, raw_b = [], []
    for i, (fi, fo) in enumerate(dims):
        bound = 1.0 / (fi ** 0.5)
        w = jax.random.uniform(keys[2 * i], (fi, fo), jnp.float32, -bound, bound)
        b = jax.random.uniform(keys[2 * i + 1], (fo,), jnp.float32, -bound, bound)
        # BatchNorm1d defaults: gamma=1, beta=0, running_mean=0, running_var=1.
        scale = 1.0 / jnp.sqrt(1.0 + BN_EPS)
        raw_w.append((w * scale).astype(jnp.bfloat16))   # fold BN scale
        raw_b.append(b * scale)                          # fold BN scale/shift

    w1, w2, w3, w4 = raw_w
    w1z = w1[:LATENT_DIM, :]                             # (28, 256)
    w1l = w1[LATENT_DIM:, :]                             # (4, 256)
    w4p = jnp.zeros((H3, OUT_PAD), jnp.bfloat16).at[:, :OUT].set(w4)

    b_packed = jnp.zeros((8, 256), jnp.float32)
    for i, (bv, fo) in enumerate(zip(raw_b, [H1, H2, H3, OUT])):
        b_packed = b_packed.at[i, :fo].set(bv)

    return (w1z, w1l, w2, w3, w4p), b_packed


def _choose_bt(batch):
    """Balanced batch tile: <=BT_MAX, multiple of 16, >=2 tiles when B>=512."""
    n_tiles = _cdiv(batch, BT_MAX)
    if batch >= 2 * MIN_SPLIT and n_tiles < 2:
        n_tiles = 2                                      # feed both v7x TCs
    return _round_up(_cdiv(batch, n_tiles), 16)


def generator_forward(z, labels, weights, b_packed):
    B = z.shape[0]
    bt = _choose_bt(B)
    b_pad = _round_up(B, bt)
    if b_pad != B:                                       # at most bt-1 (<16 rows
        z = jnp.pad(z, ((0, b_pad - B), (0, 0)))         # per tile) of padding
        labels = jnp.pad(labels, ((0, b_pad - B), (0, 0)))

    w1z, w1l, w2, w3, w4p = weights
    out = pl.pallas_call(
        generator_kernel,
        out_shape=jax.ShapeDtypeStruct((b_pad, OUT_PAD), jnp.float32),
        grid=(b_pad // bt,),
        in_specs=[
            pl.BlockSpec((bt, LATENT_DIM), lambda i: (i, 0)),   # z: batch-tiled
            pl.BlockSpec((bt, N_CLASSES), lambda i: (i, 0)),    # labels
            pl.BlockSpec(w1z.shape, lambda i: (0, 0)),          # weights stay
            pl.BlockSpec(w1l.shape, lambda i: (0, 0)),          # VMEM-resident
            pl.BlockSpec(w2.shape, lambda i: (0, 0)),
            pl.BlockSpec(w3.shape, lambda i: (0, 0)),
            pl.BlockSpec(w4p.shape, lambda i: (0, 0)),
            pl.BlockSpec(b_packed.shape, lambda i: (0, 0)),     # packed biases
        ],
        out_specs=pl.BlockSpec((bt, OUT_PAD), lambda i: (i, 0)),  # lane-dense
        compiler_params=pltpu.CompilerParams(
            dimension_semantics=("parallel",),                   # dual-TC shard
            vmem_limit_bytes=32 * 1024 * 1024),                  # v5e headroom
    )(z, labels, w1z, w1l, w2, w3, w4p, b_packed)
    return out[:B, :OUT]


def _reference_forward(z, labels, weights, b_packed):
    """Pure-JAX reference using the same folded params / dtype strategy."""
    w1z, w1l, w2, w3, w4p = weights
    h = (jnp.dot(z.astype(jnp.bfloat16), w1z, preferred_element_type=jnp.float32)
         + jnp.dot(labels.astype(jnp.bfloat16), w1l,
                   preferred_element_type=jnp.float32))
    h = jnp.maximum(h + b_packed[0, :H1][None, :], 0.0)
    h = jnp.dot(h.astype(jnp.bfloat16), w2, preferred_element_type=jnp.float32)
    h = jnp.maximum(h + b_packed[1, :H2][None, :], 0.0)
    h = jnp.dot(h.astype(jnp.bfloat16), w3, preferred_element_type=jnp.float32)
    h = jnp.maximum(h + b_packed[2, :H3][None, :], 0.0)
    h = jnp.dot(h.astype(jnp.bfloat16), w4p, preferred_element_type=jnp.float32)
    h = jnp.tanh(h + b_packed[3, :OUT_PAD][None, :])
    return h[:, :OUT]


if __name__ == "__main__":
    key = jax.random.PRNGKey(0)
    kp, kz, kl = jax.random.split(key, 3)

    weights, b_packed = make_params(kp)

    B = 8
    z = jax.random.normal(kz, (B, LATENT_DIM), jnp.float32)
    label_idx = jax.random.randint(kl, (B,), 0, N_CLASSES)
    labels = jax.nn.one_hot(label_idx, N_CLASSES, dtype=jnp.float32)

    fwd = jax.jit(generator_forward)
    out = jax.block_until_ready(fwd(z, labels, weights, b_packed))
    ref = _reference_forward(z, labels, weights, b_packed)

    assert out.shape == (B, OUT), out.shape
    assert bool(jnp.all(jnp.isfinite(out)))
    assert bool(jnp.all(jnp.abs(out) <= 1.0))          # tanh output range
    assert bool(jnp.max(jnp.abs(out - ref)) < 5e-2)    # matches pure-JAX reference
    print("KERNEL_OK")
</pallas_src>

<mosaic_0001>
module attributes {stable_mosaic.version = 11 : i64} {
  func.func @generator_kernel(%arg0: i32, %arg1: memref<16x28xf32, #tpu.memory_space<vmem>>, %arg2: memref<16x4xf32, #tpu.memory_space<vmem>>, %arg3: memref<28x256xbf16, #tpu.memory_space<vmem>>, %arg4: memref<4x256xbf16, #tpu.memory_space<vmem>>, %arg5: memref<256x128xbf16, #tpu.memory_space<vmem>>, %arg6: memref<128x64xbf16, #tpu.memory_space<vmem>>, %arg7: memref<64x128xbf16, #tpu.memory_space<vmem>>, %arg8: memref<8x256xf32, #tpu.memory_space<vmem>>, %arg9: memref<16x128xf32, #tpu.memory_space<vmem>>) attributes {dimension_semantics = [#tpu.dimension_semantics<parallel>], iteration_bounds = array<i64: 1>, scalar_prefetch = 0 : i64, scratch_operands = 0 : i64, tpu.core_type = #tpu.core_type<tc>, window_params = [{transform_indices = @transform_0, window_bounds = array<i64: 16, 28>}, {transform_indices = @transform_1, window_bounds = array<i64: 16, 4>}, {pipeline_mode = #tpu.pipeline_mode<synchronous>, transform_indices = @transform_2, window_bounds = array<i64: 28, 256>}, {pipeline_mode = #tpu.pipeline_mode<synchronous>, transform_indices = @transform_3, window_bounds = array<i64: 4, 256>}, {pipeline_mode = #tpu.pipeline_mode<synchronous>, transform_indices = @transform_4, window_bounds = array<i64: 256, 128>}, {pipeline_mode = #tpu.pipeline_mode<synchronous>, transform_indices = @transform_5, window_bounds = array<i64: 128, 64>}, {pipeline_mode = #tpu.pipeline_mode<synchronous>, transform_indices = @transform_6, window_bounds = array<i64: 64, 128>}, {pipeline_mode = #tpu.pipeline_mode<synchronous>, transform_indices = @transform_7, window_bounds = array<i64: 8, 256>}, {transform_indices = @transform_8, window_bounds = array<i64: 16, 128>}]} {
    %c0 = arith.constant 0 : index
    %c0_0 = arith.constant 0 : index
    %0 = vector.load %arg8[%c0, %c0_0] : memref<8x256xf32, #tpu.memory_space<vmem>>, vector<8x256xf32>
    %c0_1 = arith.constant 0 : index
    %c0_2 = arith.constant 0 : index
    %1 = vector.load %arg1[%c0_1, %c0_2] : memref<16x28xf32, #tpu.memory_space<vmem>>, vector<16x28xf32>
    %2 = arith.truncf %1 : vector<16x28xf32> to vector<16x28xbf16>
    %c0_3 = arith.constant 0 : index
    %c0_4 = arith.constant 0 : index
    %3 = vector.load %arg2[%c0_3, %c0_4] : memref<16x4xf32, #tpu.memory_space<vmem>>, vector<16x4xf32>
    %4 = arith.truncf %3 : vector<16x4xf32> to vector<16x4xbf16>
    %c0_5 = arith.constant 0 : index
    %c0_6 = arith.constant 0 : index
    %5 = vector.load %arg3[%c0_5, %c0_6] : memref<28x256xbf16, #tpu.memory_space<vmem>>, vector<28x256xbf16>
    %cst = arith.constant dense<0.000000e+00> : vector<16x256xf32>
    %6 = tpu.matmul %2, %5, %cst {dimension_numbers = #tpu.dot_dimension_numbers<[1], [0], [0], [1], [0, 0, 1, 1], [], []>} : vector<16x28xbf16>, vector<28x256xbf16>, vector<16x256xf32> -> vector<16x256xf32>
    %c0_7 = arith.constant 0 : index
    %c0_8 = arith.constant 0 : index
    %7 = vector.load %arg4[%c0_7, %c0_8] : memref<4x256xbf16, #tpu.memory_space<vmem>>, vector<4x256xbf16>
    %cst_9 = arith.constant dense<0.000000e+00> : vector<16x256xf32>
    %8 = tpu.matmul %4, %7, %cst_9 {dimension_numbers = #tpu.dot_dimension_numbers<[1], [0], [0], [1], [0, 0, 1, 1], [], []>} : vector<16x4xbf16>, vector<4x256xbf16>, vector<16x256xf32> -> vector<16x256xf32>
    %9 = arith.addf %6, %8 : vector<16x256xf32>
    %10 = vector.extract_strided_slice %0 {offsets = [0, 0], sizes = [1, 256], strides = [1, 1]} : vector<8x256xf32> to vector<1x256xf32>
    %11 = vector.broadcast %10 : vector<1x256xf32> to vector<16x256xf32>
    %12 = arith.addf %9, %11 : vector<16x256xf32>
    %cst_10 = arith.constant 0.000000e+00 : f32
    %13 = vector.broadcast %cst_10 : f32 to vector<16x256xf32>
    %14 = arith.maximumf %12, %13 : vector<16x256xf32>
    %15 = arith.truncf %14 : vector<16x256xf32> to vector<16x256xbf16>
    %c0_11 = arith.constant 0 : index
    %c0_12 = arith.constant 0 : index
    %16 = vector.load %arg5[%c0_11, %c0_12] : memref<256x128xbf16, #tpu.memory_space<vmem>>, vector<256x128xbf16>
    %cst_13 = arith.constant dense<0.000000e+00> : vector<16x128xf32>
    %17 = tpu.matmul %15, %16, %cst_13 {dimension_numbers = #tpu.dot_dimension_numbers<[1], [0], [0], [1], [0, 0, 1, 1], [], []>} : vector<16x256xbf16>, vector<256x128xbf16>, vector<16x128xf32> -> vector<16x128xf32>
    %18 = vector.extract_strided_slice %0 {offsets = [1, 0], sizes = [1, 128], strides = [1, 1]} : vector<8x256xf32> to vector<1x128xf32>
    %19 = vector.broadcast %18 : vector<1x128xf32> to vector<16x128xf32>
    %20 = arith.addf %17, %19 : vector<16x128xf32>
    %cst_14 = arith.constant 0.000000e+00 : f32
    %21 = vector.broadcast %cst_14 : f32 to vector<16x128xf32>
    %22 = arith.maximumf %20, %21 : vector<16x128xf32>
    %23 = arith.truncf %22 : vector<16x128xf32> to vector<16x128xbf16>
    %c0_15 = arith.constant 0 : index
    %c0_16 = arith.constant 0 : index
    %24 = vector.load %arg6[%c0_15, %c0_16] : memref<128x64xbf16, #tpu.memory_space<vmem>>, vector<128x64xbf16>
    %cst_17 = arith.constant dense<0.000000e+00> : vector<16x64xf32>
    %25 = tpu.matmul %23, %24, %cst_17 {dimension_numbers = #tpu.dot_dimension_numbers<[1], [0], [0], [1], [0, 0, 1, 1], [], []>} : vector<16x128xbf16>, vector<128x64xbf16>, vector<16x64xf32> -> vector<16x64xf32>
    %26 = vector.extract_strided_slice %0 {offsets = [2, 0], sizes = [1, 64], strides = [1, 1]} : vector<8x256xf32> to vector<1x64xf32>
    %27 = vector.broadcast %26 : vector<1x64xf32> to vector<16x64xf32>
    %28 = arith.addf %25, %27 : vector<16x64xf32>
    %cst_18 = arith.constant 0.000000e+00 : f32
    %29 = vector.broadcast %cst_18 : f32 to vector<16x64xf32>
    %30 = arith.maximumf %28, %29 : vector<16x64xf32>
    %31 = arith.truncf %30 : vector<16x64xf32> to vector<16x64xbf16>
    %c0_19 = arith.constant 0 : index
    %c0_20 = arith.constant 0 : index
    %32 = vector.load %arg7[%c0_19, %c0_20] : memref<64x128xbf16, #tpu.memory_space<vmem>>, vector<64x128xbf16>
    %cst_21 = arith.constant dense<0.000000e+00> : vector<16x128xf32>
    %33 = tpu.matmul %31, %32, %cst_21 {dimension_numbers = #tpu.dot_dimension_numbers<[1], [0], [0], [1], [0, 0, 1, 1], [], []>} : vector<16x64xbf16>, vector<64x128xbf16>, vector<16x128xf32> -> vector<16x128xf32>
    %34 = vector.extract_strided_slice %0 {offsets = [3, 0], sizes = [1, 128], strides = [1, 1]} : vector<8x256xf32> to vector<1x128xf32>
    %35 = vector.broadcast %34 : vector<1x128xf32> to vector<16x128xf32>
    %36 = arith.addf %33, %35 : vector<16x128xf32>
    %37 = math.tanh %36 : vector<16x128xf32>
    %c0_22 = arith.constant 0 : index
    %c0_23 = arith.constant 0 : index
    %38 = vector.load %arg9[%c0_22, %c0_23] : memref<16x128xf32, #tpu.memory_space<vmem>>, vector<16x128xf32>
    tpu.vector_store %arg9[%c0_22, %c0_23], %37 {strides = array<i32>} : memref<16x128xf32, #tpu.memory_space<vmem>>, vector<16x128xf32>,
    return
  }
  func.func @transform_0(%arg0: i32) -> (i32, i32) {
    %c0_i32 = arith.constant 0 : i32
    %c0_i32_0 = arith.constant 0 : i32
    return %arg0, %c0_i32 : i32, i32
  }
  func.func @transform_1(%arg0: i32) -> (i32, i32) {
    %c0_i32 = arith.constant 0 : i32
    %c0_i32_0 = arith.constant 0 : i32
    return %arg0, %c0_i32 : i32, i32
  }
  func.func @transform_2(%arg0: i32) -> (i32, i32) {
    %c0_i32 = arith.constant 0 : i32
    %c0_i32_0 = arith.constant 0 : i32
    %c0_i32_1 = arith.constant 0 : i32
    return %c0_i32, %c0_i32_0 : i32, i32
  }
  func.func @transform_3(%arg0: i32) -> (i32, i32) {
    %c0_i32 = arith.constant 0 : i32
    %c0_i32_0 = arith.constant 0 : i32
    %c0_i32_1 = arith.constant 0 : i32
    return %c0_i32, %c0_i32_0 : i32, i32
  }
  func.func @transform_4(%arg0: i32) -> (i32, i32) {
    %c0_i32 = arith.constant 0 : i32
    %c0_i32_0 = arith.constant 0 : i32
    %c0_i32_1 = arith.constant 0 : i32
    return %c0_i32, %c0_i32_0 : i32, i32
  }
  func.func @transform_5(%arg0: i32) -> (i32, i32) {
    %c0_i32 = arith.constant 0 : i32
    %c0_i32_0 = arith.constant 0 : i32
    %c0_i32_1 = arith.constant 0 : i32
    return %c0_i32, %c0_i32_0 : i32, i32
  }
  func.func @transform_6(%arg0: i32) -> (i32, i32) {
    %c0_i32 = arith.constant 0 : i32
    %c0_i32_0 = arith.constant 0 : i32
    %c0_i32_1 = arith.constant 0 : i32
    return %c0_i32, %c0_i32_0 : i32, i32
  }
  func.func @transform_7(%arg0: i32) -> (i32, i32) {
    %c0_i32 = arith.constant 0 : i32
    %c0_i32_0 = arith.constant 0 : i32
    %c0_i32_1 = arith.constant 0 : i32
    return %c0_i32, %c0_i32_0 : i32, i32
  }
  func.func @transform_8(%arg0: i32) -> (i32, i32) {
    %c0_i32 = arith.constant 0 : i32
    %c0_i32_0 = arith.constant 0 : i32
    return %arg0, %c0_i32 : i32, i32
  }
}

</mosaic_0001>

<llo_original>
// kernel: generator_forward.1
$region0: #{generator_forward.1}
  #allocation0 [shape = 'u32[]', space=smem, size = 0x4, offset = 0x4, fixed_abs, tag = 'smem constant byte address 0x4 - core index']
  #allocation1 [shape = 'u32[72,128]{1,0:T(1,128)}', space=vmem, size = 0x9000, scoped, tag = 'internal scratch']
  %s0 = inlined_call_operand.vmem [shape: f32[16,28], index: 0, kind: input, shape index: {}]
  %s1 = inlined_call_operand.vmem [shape: f32[16,4], index: 1, kind: input, shape index: {}]
  %s2 = inlined_call_operand.vmem [shape: bf16[28,256], index: 2, kind: input, shape index: {}]
  %s3 = inlined_call_operand.vmem [shape: bf16[4,256], index: 3, kind: input, shape index: {}]
  %s4 = inlined_call_operand.hbm [shape: bf16[256,128], index: 4, kind: input, shape index: {}]
  %s5 = inlined_call_operand.vmem [shape: bf16[128,64], index: 5, kind: input, shape index: {}]
  %s6 = inlined_call_operand.vmem [shape: bf16[64,128], index: 6, kind: input, shape index: {}]
  %s7 = inlined_call_operand.vmem [shape: f32[8,256], index: 7, kind: input, shape index: {}]
  %s8 = inlined_call_operand.vmem [shape: f32[16,128], index: 8, kind: output, shape index: {}]
  %s9 = sld [smem:[#allocation0]]
  $region46: #{generator_forward.1} parent=0
    _
  %s11 = ssub.s32 1, %s9
  %s12 = scalar_select 0, %s11, %s9
  $region1: #{generator_forward.1} parent=0
    #allocation2 [shape = 'u8[65536]{0}', space=vmem, size = 0x10000, scoped, tag = 'input window, operand 4, single buffered']
    #allocation3 [shape = 's32[1]{0}', space=sflag, size = 0x4, scoped, tag = 'scoped memory for generator_forward.1']
    %13 = vsyncpa [#allocation3], 0
    // Predicated region
    $region2: #{generator_forward.1} parent=1 // pred_check
      _
    $region3: #{generator_forward.1} parent=1 // pred_check_branch
      %15 = sbr.rel (0) target = $region5
    $region4: #{generator_forward.1} parent=1 // pred_region
      _
    $region5: #{generator_forward.1} parent=1 // pred_fallthru
      _
    // Predicated region
    $region6: #{generator_forward.1} parent=1 // pred_check
      _
    $region7: #{generator_forward.1} parent=1 // pred_check_branch
      %17 = sbr.rel (0) target = $region9
    $region8: #{generator_forward.1} parent=1 // pred_region
      _
    $region9: #{generator_forward.1} parent=1 // pred_fallthru
      _
    // Predicated region
    $region10: #{generator_forward.1} parent=1 // pred_check
      _
    $region11: #{generator_forward.1} parent=1 // pred_check_branch
      %19 = sbr.rel (0) target = $region13
    $region12: #{generator_forward.1} parent=1 // pred_region
      _
    $region13: #{generator_forward.1} parent=1 // pred_fallthru
      _
    // Predicated region
    $region14: #{generator_forward.1} parent=1 // pred_check
      _
    $region15: #{generator_forward.1} parent=1 // pred_check_branch
      %21 = sbr.rel (0) target = $region17
    $region16: #{generator_forward.1} parent=1 // pred_region
      _
    $region17: #{generator_forward.1} parent=1 // pred_fallthru
      _
    // Predicated region
    $region18: #{generator_forward.1} parent=1 // pred_check
      _
    $region19: #{generator_forward.1} parent=1 // pred_check_branch
      %23 = sbr.rel (0) target = $region21
    $region20: #{generator_forward.1} parent=1 // pred_region
      %25 = vsyncadd [#allocation3], 0
      %s26 = sshll.u32 %s4, 4
      %s27 = int_to_ptr.hbm [resolvable:$true] %s26
      %s28 = sshll.u32 [#allocation2], 4
      %s29 = int_to_ptr.vmem [resolvable:$true] %s28
      %34 = dma.hbm_to_vmem [thread:$0]  %s27, 2048, %s29, [#allocation3], 64, 64, 4
    $region21: #{generator_forward.1} parent=1 // pred_fallthru
      _
    // Predicated region
    $region22: #{generator_forward.1} parent=1 // pred_check
      _
    $region23: #{generator_forward.1} parent=1 // pred_check_branch
      %36 = sbr.rel (0) target = $region25
    $region24: #{generator_forward.1} parent=1 // pred_region
      _
    $region25: #{generator_forward.1} parent=1 // pred_fallthru
      _
    // Predicated region
    $region26: #{generator_forward.1} parent=1 // pred_check
      _
    $region27: #{generator_forward.1} parent=1 // pred_check_branch
      %38 = sbr.rel (0) target = $region29
    $region28: #{generator_forward.1} parent=1 // pred_region
      _
    $region29: #{generator_forward.1} parent=1 // pred_fallthru
      _
    // Predicated region
    $region30: #{generator_forward.1} parent=1 // pred_check
      _
    $region31: #{generator_forward.1} parent=1 // pred_check_branch
      %40 = sbr.rel (0) target = $region33
    $region32: #{generator_forward.1} parent=1 // pred_region
      _
    $region33: #{generator_forward.1} parent=1 // pred_fallthru
      _
    // Predicated region
    $region34: #{generator_forward.1} parent=1 // pred_check
      _
    $region35: #{generator_forward.1} parent=1 // pred_check_branch
      %42 = sbr.rel (0) target = $region37
    $region36: #{generator_forward.1} parent=1 // pred_region
      %44 = dma.done [#allocation3], 2048
    $region37: #{generator_forward.1} parent=1 // pred_fallthru
      _
    %v46 = vld [vmem:[%s7] sm:$0xff]
    %v47 = vld [vmem:[%s7 + $0x8] sm:$0xff]
    %v48 = vld [vmem:[%s0] sm:$0xff]
    %v49 = vld [vmem:[%s0 + $0x8] sm:$0xff]
    %v50 = vpack.c.bf16 %v49, %v48
    %v51 = vld [vmem:[%s1] sm:$0xff]
    %v52 = vld [vmem:[%s1 + $0x8] sm:$0xff]
    %v53 = vpack.c.bf16 %v52, %v51
    %v54 = vld [vmem:[%s2] sm:$0xff]
    %v55 = vld [vmem:[%s2 + $0x8] sm:$0xff]
    %v56 = vld [vmem:[%s2 + $0x10] sm:$0xff]
    %v57 = vld [vmem:[%s2 + $0x18] sm:$0x33]
    %v58 = vld [vmem:[%s3] sm:$0xf]
    %60 = vst [vmem:[#allocation1] ss:$4 sm:$0xff] %v58
    %v61 = vld.sshfl [vmem:[#allocation1] sm:$0xff pattern:$0x73625140]
    %v62 = vld.sshfl [vmem:[#allocation1 + $0x8] sm:$0xff pattern:$0x73625140]
    %vm63 = vcmask 31744
    %v65 = vsel %vm63, %v53, 0
    %vm67 = vcmask 1041408
    %v68 = vsel %vm67, %v61, 0
    %v70 = vsel %vm67, %v62, 0
    %72 = vmatpush.bf16.msra.mxu0 0
    %73 = vmatpush.bf16.msra.mxu0 0
    %74 = vmatpush.bf16.msra.mxu0 0
    %75 = vmatpush.bf16.msra.mxu0 0
    %76 = vmatpush.bf16.msra.mxu0 0
    %77 = vmatpush.bf16.msra.mxu0 0
    %78 = vmatpush.bf16.msra.mxu0 0
    %79 = vmatpush.bf16.msra.mxu0 %v68
    %80 = vmatmul.bf16.gmra.mxu0 %v65
    %v81 = vpop.f32.mrf.mxu0
    %v82 = vadd.f32 0.0, %v81
    %v83 = vpop.f32.mrf.mxu0
    %v84 = vadd.f32 0.0, %v83
    %85 = vdwg.mxu0
    %86 = vmatpush.bf16.msra.mxu0 0
    %87 = vmatpush.bf16.msra.mxu0 0
    %88 = vmatpush.bf16.msra.mxu0 0
    %89 = vmatpush.bf16.msra.mxu0 0
    %90 = vmatpush.bf16.msra.mxu0 0
    %91 = vmatpush.bf16.msra.mxu0 0
    %92 = vmatpush.bf16.msra.mxu0 0
    %93 = vmatpush.bf16.msra.mxu0 %v70
    %94 = vmatmul.bf16.gmra.mxu0 %v65
    %v95 = vpop.f32.mrf.mxu0
    %v96 = vadd.f32 0.0, %v95
    %v97 = vpop.f32.mrf.mxu0
    %v98 = vadd.f32 0.0, %v97
    %99 = vdwg.mxu0
    %v104 = vunpack.c.l.b16 %v54
    %v105 = vunpack.c.h.b16 %v54
    %v106 = vunpack.c.l.b16 %v55
    %v107 = vunpack.c.h.b16 %v55
    %v108 = vunpack.c.l.b16 %v56
    %v109 = vunpack.c.h.b16 %v56
    %v110 = vunpack.c.l.b16 %v57
    %v111 = vunpack.c.h.b16 %v57
    %v112 = vpack.c.b16 %v106, %v104
    %v113 = vpack.c.b16 %v107, %v105
    %v114 = vpack.c.b16 %v110, %v108
    %v115 = vpack.c.b16 %v111, %v109
    %vm118 = vcmask 228352
    %v120 = vsel %vm118, %v50, 0
    %vm122 = vcmask 1045504
    %v124 = vsel %vm122, %v114, 0
    %v127 = vsel %vm122, %v115, 0
    %129 = vmatpush.bf16.msra.mxu0 0
    %130 = vmatpush.bf16.msra.mxu0 0
    %131 = vmatpush.bf16.msra.mxu0 0
    %132 = vmatpush.bf16.msra.mxu0 0
    %133 = vmatpush.bf16.msra.mxu0 0
    %134 = vmatpush.bf16.msra.mxu0 0
    %135 = vmatpush.bf16.msra.mxu0 %v124
    %136 = vmatpush.bf16.msra.mxu0 %v112
    %137 = vmatmul.bf16.gmra.mxu0 %v120
    %v138 = vpop.f32.mrf.mxu0
    %v139 = vadd.f32 %v82, %v138
    %v140 = vpop.f32.mrf.mxu0
    %v141 = vadd.f32 %v84, %v140
    %142 = vdwg.mxu0
    %143 = vmatpush.bf16.msra.mxu0 0
    %144 = vmatpush.bf16.msra.mxu0 0
    %145 = vmatpush.bf16.msra.mxu0 0
    %146 = vmatpush.bf16.msra.mxu0 0
    %147 = vmatpush.bf16.msra.mxu0 0
    %148 = vmatpush.bf16.msra.mxu0 0
    %149 = vmatpush.bf16.msra.mxu0 %v127
    %150 = vmatpush.bf16.msra.mxu0 %v113
    %151 = vmatmul.bf16.gmra.mxu0 %v120
    %v152 = vpop.f32.mrf.mxu0
    %v153 = vadd.f32 %v96, %v152
    %v154 = vpop.f32.mrf.mxu0
    %v155 = vadd.f32 %v98, %v154
    %156 = vdwg.mxu0
    %v157 = vperm.slane %v46, 0
    %v158 = vperm.slane %v47, 0
    %v159 = vadd.f32 %v139, %v157
    %v160 = vadd.f32 %v153, %v158
    %v161 = vadd.f32 %v141, %v157
    %v162 = vadd.f32 %v155, %v158
    %v163 = vmax.f32 %v159, 0.0
    %v164 = vmax.f32 %v160, 0.0
    %v165 = vmax.f32 %v161, 0.0
    %v166 = vmax.f32 %v162, 0.0
    %v167 = vpack.c.bf16 %v165, %v163
    %v168 = vpack.c.bf16 %v166, %v164
    %v169 = vld [vmem:[#allocation2] sm:$0xf]
    %v170 = vld [vmem:[#allocation2 + $0x4] sm:$0xf]
    %v171 = vld [vmem:[#allocation2 + $0x8] sm:$0xf]
    %v172 = vld [vmem:[#allocation2 + $0xc] sm:$0xf]
    %v173 = vld [vmem:[#allocation2 + $0x10] sm:$0xf]
    %v174 = vld [vmem:[#allocation2 + $0x14] sm:$0xf]
    %v175 = vld [vmem:[#allocation2 + $0x18] sm:$0xf]
    %v176 = vld [vmem:[#allocation2 + $0x1c] sm:$0xf]
    %v177 = vld [vmem:[#allocation2 + $0x20] sm:$0xf]
    %v178 = vld [vmem:[#allocation2 + $0x24] sm:$0xf]
    %v179 = vld [vmem:[#allocation2 + $0x28] sm:$0xf]
    %v180 = vld [vmem:[#allocation2 + $0x2c] sm:$0xf]
    %v181 = vld [vmem:[#allocation2 + $0x30] sm:$0xf]
    %v182 = vld [vmem:[#allocation2 + $0x34] sm:$0xf]
    %v183 = vld [vmem:[#allocation2 + $0x38] sm:$0xf]
    %v184 = vld [vmem:[#allocation2 + $0x3c] sm:$0xf]
    %v185 = vld [vmem:[#allocation2 + $0x40] sm:$0xf]
    %v186 = vld [vmem:[#allocation2 + $0x44] sm:$0xf]
    %v187 = vld [vmem:[#allocation2 + $0x48] sm:$0xf]
    %v188 = vld [vmem:[#allocation2 + $0x4c] sm:$0xf]
    %v189 = vld [vmem:[#allocation2 + $0x50] sm:$0xf]
    %v190 = vld [vmem:[#allocation2 + $0x54] sm:$0xf]
    %v191 = vld [vmem:[#allocation2 + $0x58] sm:$0xf]
    %v192 = vld [vmem:[#allocation2 + $0x5c] sm:$0xf]
    %v193 = vld [vmem:[#allocation2 + $0x60] sm:$0xf]
    %v194 = vld [vmem:[#allocation2 + $0x64] sm:$0xf]
    %v195 = vld [vmem:[#allocation2 + $0x68] sm:$0xf]
    %v196 = vld [vmem:[#allocation2 + $0x6c] sm:$0xf]
    %v197 = vld [vmem:[#allocation2 + $0x70] sm:$0xf]
    %v198 = vld [vmem:[#allocation2 + $0x74] sm:$0xf]
    %v199 = vld [vmem:[#allocation2 + $0x78] sm:$0xf]
    %v200 = vld [vmem:[#allocation2 + $0x7c] sm:$0xf]
    %v201 = vperm.slane %v46, 1
    %v234 = vunpack.c.l.b16 %v169
    %v235 = vunpack.c.l.b16 %v170
    %v236 = vunpack.c.l.b16 %v171
    %v237 = vunpack.c.l.b16 %v172
    %v238 = vunpack.c.l.b16 %v173
    %v239 = vunpack.c.l.b16 %v174
    %v240 = vunpack.c.l.b16 %v175
    %v241 = vunpack.c.l.b16 %v176
    %v242 = vunpack.c.l.b16 %v177
    %v243 = vunpack.c.l.b16 %v178
    %v244 = vunpack.c.l.b16 %v179
    %v245 = vunpack.c.l.b16 %v180
    %v246 = vunpack.c.l.b16 %v181
    %v247 = vunpack.c.l.b16 %v182
    %v248 = vunpack.c.l.b16 %v183
    %v249 = vunpack.c.l.b16 %v184
    %v250 = vunpack.c.l.b16 %v185
    %v251 = vunpack.c.l.b16 %v186
    %v252 = vunpack.c.l.b16 %v187
    %v253 = vunpack.c.l.b16 %v188
    %v254 = vunpack.c.l.b16 %v189
    %v255 = vunpack.c.l.b16 %v190
    %v256 = vunpack.c.l.b16 %v191
    %v257 = vunpack.c.l.b16 %v192
    %v258 = vunpack.c.l.b16 %v193
    %v259 = vunpack.c.l.b16 %v194
    %v260 = vunpack.c.l.b16 %v195
    %v261 = vunpack.c.l.b16 %v196
    %v262 = vunpack.c.l.b16 %v197
    %v263 = vunpack.c.l.b16 %v198
    %v264 = vunpack.c.l.b16 %v199
    %v265 = vunpack.c.l.b16 %v200
    %v266 = vpack.c.b16 %v235, %v234
    %v267 = vpack.c.b16 %v237, %v236
    %v268 = vpack.c.b16 %v239, %v238
    %v269 = vpack.c.b16 %v241, %v240
    %v270 = vpack.c.b16 %v243, %v242
    %v271 = vpack.c.b16 %v245, %v244
    %v272 = vpack.c.b16 %v247, %v246
    %v273 = vpack.c.b16 %v249, %v248
    %v274 = vpack.c.b16 %v251, %v250
    %v275 = vpack.c.b16 %v253, %v252
    %v276 = vpack.c.b16 %v255, %v254
    %v277 = vpack.c.b16 %v257, %v256
    %v278 = vpack.c.b16 %v259, %v258
    %v279 = vpack.c.b16 %v261, %v260
    %v280 = vpack.c.b16 %v263, %v262
    %v281 = vpack.c.b16 %v265, %v264
    %298 = vmatpush.bf16.msra.mxu0 %v273
    %299 = vmatpush.bf16.msra.mxu0 %v272
    %300 = vmatpush.bf16.msra.mxu0 %v271
    %301 = vmatpush.bf16.msra.mxu0 %v270
    %302 = vmatpush.bf16.msra.mxu0 %v269
    %303 = vmatpush.bf16.msra.mxu0 %v268
    %304 = vmatpush.bf16.msra.mxu0 %v267
    %305 = vmatpush.bf16.msra.mxu0 %v266
    %306 = vmatmul.bf16.gmra.mxu0 %v167
    %v307 = vpop.f32.mrf.mxu0
    %v308 = vadd.f32 %v201, %v307
    %v309 = vpop.f32.mrf.mxu0
    %v310 = vadd.f32 %v201, %v309
    %311 = vdwg.mxu0
    %312 = vmatpush.bf16.msra.mxu0 %v281
    %313 = vmatpush.bf16.msra.mxu0 %v280
    %314 = vmatpush.bf16.msra.mxu0 %v279
    %315 = vmatpush.bf16.msra.mxu0 %v278
    %316 = vmatpush.bf16.msra.mxu0 %v277
    %317 = vmatpush.bf16.msra.mxu0 %v276
    %318 = vmatpush.bf16.msra.mxu0 %v275
    %319 = vmatpush.bf16.msra.mxu0 %v274
    %320 = vmatmul.bf16.gmra.mxu0 %v168
    %v321 = vpop.f32.mrf.mxu0
    %v322 = vadd.f32 %v308, %v321
    %v323 = vpop.f32.mrf.mxu0
    %v324 = vadd.f32 %v310, %v323
    %325 = vdwg.mxu0
    %v326 = vmax.f32 %v322, 0.0
    %v327 = vmax.f32 %v324, 0.0
    %v328 = vpack.c.bf16 %v327, %v326
    %v329 = vld [vmem:[%s5] sm:$0xf]
    %v330 = vld [vmem:[%s5 + $0x4] sm:$0xf]
    %v331 = vld [vmem:[%s5 + $0x8] sm:$0xf]
    %v332 = vld [vmem:[%s5 + $0xc] sm:$0xf]
    %v333 = vld [vmem:[%s5 + $0x10] sm:$0xf]
    %v334 = vld [vmem:[%s5 + $0x14] sm:$0xf]
    %v335 = vld [vmem:[%s5 + $0x18] sm:$0xf]
    %v336 = vld [vmem:[%s5 + $0x1c] sm:$0xf]
    %v337 = vld [vmem:[%s5 + $0x20] sm:$0xf]
    %v338 = vld [vmem:[%s5 + $0x24] sm:$0xf]
    %v339 = vld [vmem:[%s5 + $0x28] sm:$0xf]
    %v340 = vld [vmem:[%s5 + $0x2c] sm:$0xf]
    %v341 = vld [vmem:[%s5 + $0x30] sm:$0xf]
    %v342 = vld [vmem:[%s5 + $0x34] sm:$0xf]
    %v343 = vld [vmem:[%s5 + $0x38] sm:$0xf]
    %v344 = vld [vmem:[%s5 + $0x3c] sm:$0xf]
    %v345 = vperm.slane %v46, 2
    %v362 = vunpack.c.l.b16 %v329
    %v363 = vunpack.c.l.b16 %v330
    %v364 = vunpack.c.l.b16 %v331
    %v365 = vunpack.c.l.b16 %v332
    %v366 = vunpack.c.l.b16 %v333
    %v367 = vunpack.c.l.b16 %v334
    %v368 = vunpack.c.l.b16 %v335
    %v369 = vunpack.c.l.b16 %v336
    %v370 = vunpack.c.l.b16 %v337
    %v371 = vunpack.c.l.b16 %v338
    %v372 = vunpack.c.l.b16 %v339
    %v373 = vunpack.c.l.b16 %v340
    %v374 = vunpack.c.l.b16 %v341
    %v375 = vunpack.c.l.b16 %v342
    %v376 = vunpack.c.l.b16 %v343
    %v377 = vunpack.c.l.b16 %v344
    %v378 = vpack.c.b16 %v363, %v362
    %v379 = vpack.c.b16 %v365, %v364
    %v380 = vpack.c.b16 %v367, %v366
    %v381 = vpack.c.b16 %v369, %v368
    %v382 = vpack.c.b16 %v371, %v370
    %v383 = vpack.c.b16 %v373, %v372
    %v384 = vpack.c.b16 %v375, %v374
    %v385 = vpack.c.b16 %v377, %v376
    %394 = vmatpush.bf16.msra.mxu0 %v385
    %395 = vmatpush.bf16.msra.mxu0 %v384
    %396 = vmatpush.bf16.msra.mxu0 %v383
    %397 = vmatpush.bf16.msra.mxu0 %v382
    %398 = vmatpush.bf16.msra.mxu0 %v381
    %399 = vmatpush.bf16.msra.mxu0 %v380
    %400 = vmatpush.bf16.msra.mxu0 %v379
    %401 = vmatpush.bf16.msra.mxu0 %v378
    %402 = vmatmul.bf16.gmra.mxu0 %v328
    %v403 = vpop.f32.mrf.mxu0
    %v404 = vadd.f32 %v345, %v403
    %v405 = vpop.f32.mrf.mxu0
    %v406 = vadd.f32 %v345, %v405
    %407 = vdwg.mxu0
    %v408 = vmax.f32 %v404, 0.0
    %v409 = vmax.f32 %v406, 0.0
    %v410 = vpack.c.bf16 %v409, %v408
    %v411 = vld [vmem:[%s6] sm:$0xf]
    %v412 = vld [vmem:[%s6 + $0x4] sm:$0xf]
    %v413 = vld [vmem:[%s6 + $0x8] sm:$0xf]
    %v414 = vld [vmem:[%s6 + $0xc] sm:$0xf]
    %v415 = vld [vmem:[%s6 + $0x10] sm:$0xf]
    %v416 = vld [vmem:[%s6 + $0x14] sm:$0xf]
    %v417 = vld [vmem:[%s6 + $0x18] sm:$0xf]
    %v418 = vld [vmem:[%s6 + $0x1c] sm:$0xf]
    %v419 = vperm.slane %v46, 3
    %v428 = vunpack.c.l.b16 %v411
    %v429 = vunpack.c.l.b16 %v412
    %v430 = vunpack.c.l.b16 %v413
    %v431 = vunpack.c.l.b16 %v414
    %v432 = vunpack.c.l.b16 %v415
    %v433 = vunpack.c.l.b16 %v416
    %v434 = vunpack.c.l.b16 %v417
    %v435 = vunpack.c.l.b16 %v418
    %v436 = vpack.c.b16 %v429, %v428
    %v437 = vpack.c.b16 %v431, %v430
    %v438 = vpack.c.b16 %v433, %v432
    %v439 = vpack.c.b16 %v435, %v434
    %vm444 = vcmask 523264
    %v446 = vsel %vm444, %v410, 0
    %448 = vmatpush.bf16.msra.mxu0 0
    %449 = vmatpush.bf16.msra.mxu0 0
    %450 = vmatpush.bf16.msra.mxu0 0
    %451 = vmatpush.bf16.msra.mxu0 0
    %452 = vmatpush.bf16.msra.mxu0 %v439
    %453 = vmatpush.bf16.msra.mxu0 %v438
    %454 = vmatpush.bf16.msra.mxu0 %v437
    %455 = vmatpush.bf16.msra.mxu0 %v436
    %456 = vmatmul.bf16.gmra.mxu0 %v446
    %v457 = vpop.f32.mrf.mxu0
    %v458 = vadd.f32 %v419, %v457
    %v459 = vpop.f32.mrf.mxu0
    %v460 = vadd.f32 %v419, %v459
    %461 = vdwg.mxu0
    %v462 = vtanh.pop %v458
    %v463 = vtanh.pop %v460
    %464 = vst [vmem:[%s8] sm:$0xff] %v462
    %465 = vst [vmem:[%s8 + $0x8] sm:$0xff] %v463
    // Predicated region
    $region38: #{generator_forward.1} parent=1 // pred_check
      _
    $region39: #{generator_forward.1} parent=1 // pred_check_branch
      %467 = sbr.rel (0) target = $region41
    $region40: #{generator_forward.1} parent=1 // pred_region
      _
    $region41: #{generator_forward.1} parent=1 // pred_fallthru
      _
    // Predicated region
    $region42: #{generator_forward.1} parent=1 // pred_check
      _
    $region43: #{generator_forward.1} parent=1 // pred_check_branch
      %469 = sbr.rel (0) target = $region45
    $region44: #{generator_forward.1} parent=1 // pred_region
      _
    $region45: #{generator_forward.1} parent=1 // pred_fallthru
      _
    %470 = vsyncpa [#allocation3], 1

</llo_original>
